<compile_context>
chip_gen: v5e
topology: v5e:2x2
jax: 0.10.0
libtpu: 0.0.40
codegen_flags: <defaults>
</compile_context>

<pallas_src>
import math

import jax
import jax.numpy as jnp
from jax.experimental import pallas as pl
from jax.experimental.pallas import tpu as pltpu

KERNEL_SIZE = 3
EPS = 1e-6  # nn.LayerNorm(..., eps=1e-06) in the original module


def _mosaic_params(working_bytes):
    # Raise the default 32 MiB scoped-VMEM limit with headroom for Mosaic
    # scratch + double-buffered I/O blocks, but stay well under v7x's 64 MiB
    # per-TensorCore physical VMEM.
    limit = int(min(max(32 * 2**20, 3 * working_bytes), 56 * 2**20))
    return pltpu.CompilerParams(dimension_semantics=("parallel",),
                                vmem_limit_bytes=limit)


# ---------------------------------------------------------------------------
# Natural-layout path: x stays (B, D, L).  Used when L % 128 == 0.
# ---------------------------------------------------------------------------
def _lpe_kernel_natural(x_ref, w_ref, b_ref, g_ref, be_ref, o_ref):
    # x_ref : (Bb, D, L)  one batch block, natural NCL layout
    # w_ref : (3, D, D)   w_ref[k] = weight[:, :, k]
    # b_ref : (D, 1)      conv bias
    # g_ref : (1, L)      LayerNorm gamma (applied along the length axis)
    # be_ref: (1, L)      LayerNorm beta
    bb, _, l = x_ref.shape
    lane = jax.lax.broadcasted_iota(jnp.int32, (1, l), 1)
    mask_l = (lane > 0).astype(jnp.float32)        # zero at l == 0
    mask_r = (lane < l - 1).astype(jnp.float32)    # zero at l == L-1
    w0 = w_ref[0]
    w1 = w_ref[1]
    w2 = w_ref[2]
    bias = b_ref[...]
    gamma = g_ref[...]
    beta = be_ref[...]
    inv_len = 1.0 / l
    for b in range(bb):                            # static unroll; bb kept small
        x = x_ref[b]                               # (D, L)
        # Conv1d(k=3, stride=1, pad=1): center tap + rolled/masked +-1 taps,
        # accumulated into a single (D, L) buffer (no (3D, L) intermediate).
        conv = jnp.dot(w1, x, preferred_element_type=jnp.float32)
        conv = conv + pltpu.roll(
            jnp.dot(w0, x, preferred_element_type=jnp.float32),
            shift=1, axis=1) * mask_l
        conv = conv + pltpu.roll(
            jnp.dot(w2, x, preferred_element_type=jnp.float32),
            shift=l - 1, axis=1) * mask_r
        conv = conv + bias
        y = jnp.maximum(conv, 0.0) + x             # ReLU + residual
        # LayerNorm over the length axis: lane reduction (XLU) + free broadcast.
        mean = jnp.sum(y, axis=1, keepdims=True) * inv_len
        cen = y - mean
        var = jnp.sum(cen * cen, axis=1, keepdims=True) * inv_len
        inv = jax.lax.rsqrt(var + EPS)
        o_ref[b] = (cen * inv * gamma + beta).astype(o_ref.dtype)


def _forward_natural(x, w3, bias, gamma, beta, block_batch):
    B, D, L = x.shape
    if block_batch is None:
        per_sample = D * L * 4
        block_batch = max(1, min((2 * 2**20) // per_sample, 8))   # ~2 MiB x-block
        if B >= 2:
            block_batch = min(block_batch, max(1, B // 2))        # >=2 parallel blocks (v7x)
    block_batch = max(1, min(block_batch, B))
    num_blocks = pl.cdiv(B, block_batch)
    b_pad = num_blocks * block_batch
    xp = x if b_pad == B else jnp.pad(x, ((0, b_pad - B), (0, 0), (0, 0)))

    io_bytes = (2 * block_batch * D * L + 3 * D * D + D + 2 * L) * 4
    out = pl.pallas_call(
        _lpe_kernel_natural,
        out_shape=jax.ShapeDtypeStruct((b_pad, D, L), jnp.float32),
        grid=(num_blocks,),
        in_specs=[
            pl.BlockSpec((block_batch, D, L), lambda i: (i, 0, 0)),   # x batch block
            pl.BlockSpec((KERNEL_SIZE, D, D), lambda i: (0, 0, 0)),   # conv taps
            pl.BlockSpec((D, 1), lambda i: (0, 0)),                   # conv bias
            pl.BlockSpec((1, L), lambda i: (0, 0)),                   # gamma
            pl.BlockSpec((1, L), lambda i: (0, 0)),                   # beta
        ],
        out_specs=pl.BlockSpec((block_batch, D, L), lambda i: (i, 0, 0)),
        compiler_params=_mosaic_params(io_bytes),
    )(xp, w3, bias.reshape(D, 1), gamma.reshape(1, L), beta.reshape(1, L))
    return out[:B] if b_pad != B else out


# ---------------------------------------------------------------------------
# Lane-packed path: x repacked to (D, B*L).  Used only when L % 128 != 0.
# ---------------------------------------------------------------------------
def _lpe_kernel_packed(x_ref, w_ref, b_ref, g_ref, be_ref, ml_ref, mr_ref,
                       avg_ref, exp_ref, o_ref):
    # x_ref  : (D, C)   C = block_batch * L; column c = b*L + l
    # w_ref  : (3, D, D)
    # b_ref  : (D, 1)
    # g_ref  : (1, C)   gamma tiled per sample (gamma[c % L]); be_ref likewise
    # ml_ref : (1, C)   0 at the first column of each sample, else 1
    # mr_ref : (1, C)   0 at the last column of each sample, else 1
    # avg_ref: (C, Bb)  column -> its sample, weight 1/L (segment mean)
    # exp_ref: (Bb, C)  sample -> its L columns, weight 1 (segment broadcast)
    x = x_ref[...]
    _, c = x.shape
    conv = jnp.dot(w_ref[1], x, preferred_element_type=jnp.float32)
    conv = conv + pltpu.roll(
        jnp.dot(w_ref[0], x, preferred_element_type=jnp.float32),
        shift=1, axis=1) * ml_ref[...]
    conv = conv + pltpu.roll(
        jnp.dot(w_ref[2], x, preferred_element_type=jnp.float32),
        shift=c - 1, axis=1) * mr_ref[...]
    conv = conv + b_ref[...]
    y = jnp.maximum(conv, 0.0) + x

    mean = jnp.dot(y, avg_ref[...], preferred_element_type=jnp.float32)       # (D, Bb)
    e_y2 = jnp.dot(y * y, avg_ref[...], preferred_element_type=jnp.float32)   # (D, Bb)
    var = jnp.maximum(e_y2 - mean * mean, 0.0)
    inv = jax.lax.rsqrt(var + EPS)
    mean_b = jnp.dot(mean, exp_ref[...], preferred_element_type=jnp.float32)  # (D, C)
    inv_b = jnp.dot(inv, exp_ref[...], preferred_element_type=jnp.float32)    # (D, C)
    o_ref[...] = ((y - mean_b) * inv_b * g_ref[...] + be_ref[...]).astype(o_ref.dtype)


def _forward_packed(x, w3, bias, gamma, beta, block_batch):
    B, D, L = x.shape
    base = 128 // math.gcd(L, 128)                 # samples per 128-lane alignment
    if block_batch is None:
        # ~2048 lanes per grid step (fits v7x's smaller per-TC VMEM), capped so
        # the padded batch is not inflated and, when possible, so the grid keeps
        # >=2 parallel blocks for v7x's two TensorCores.
        bb = max(base, (max(2048 // L, 1) // base) * base)
        bb = min(bb, base * pl.cdiv(B, base))
        if B >= 2 * base:
            bb = min(bb, max(1, B // (2 * base)) * base)
        block_batch = max(base, bb)
    else:
        block_batch = base * pl.cdiv(block_batch, base)
    num_blocks = pl.cdiv(B, block_batch)
    b_pad = num_blocks * block_batch
    cols = block_batch * L                         # lanes per block (multiple of 128)

    xp = x if b_pad == B else jnp.pad(x, ((0, b_pad - B), (0, 0), (0, 0)))
    xt = jnp.transpose(xp, (1, 0, 2)).reshape(D, b_pad * L)   # lane-packed slab

    pos = jnp.arange(cols, dtype=jnp.int32) % L
    seg = jnp.arange(cols, dtype=jnp.int32) // L
    gamma_t = jnp.tile(gamma, block_batch).reshape(1, cols)
    beta_t = jnp.tile(beta, block_batch).reshape(1, cols)
    mask_l = (pos != 0).astype(jnp.float32).reshape(1, cols)
    mask_r = (pos != L - 1).astype(jnp.float32).reshape(1, cols)
    onehot = (seg[:, None] == jnp.arange(block_batch)[None, :]).astype(jnp.float32)
    avg_mat = onehot / L                                       # (cols, block_batch)
    exp_mat = onehot.T                                         # (block_batch, cols)

    const2 = lambda i: (0, 0)
    io_bytes = (2 * D * cols + 3 * D * D + D + 4 * cols + 2 * cols * block_batch) * 4
    out_flat = pl.pallas_call(
        _lpe_kernel_packed,
        out_shape=jax.ShapeDtypeStruct((D, b_pad * L), jnp.float32),
        grid=(num_blocks,),
        in_specs=[
            pl.BlockSpec((D, cols), lambda i: (0, i)),              # x slab (blocked)
            pl.BlockSpec((KERNEL_SIZE, D, D), lambda i: (0, 0, 0)), # conv taps
            pl.BlockSpec((D, 1), const2),                           # conv bias
            pl.BlockSpec((1, cols), const2),                        # gamma (tiled)
            pl.BlockSpec((1, cols), const2),                        # beta (tiled)
            pl.BlockSpec((1, cols), const2),                        # left-edge mask
            pl.BlockSpec((1, cols), const2),                        # right-edge mask
            pl.BlockSpec((cols, block_batch), const2),              # segment-average
            pl.BlockSpec((block_batch, cols), const2),              # segment-broadcast
        ],
        out_specs=pl.BlockSpec((D, cols), lambda i: (0, i)),
        compiler_params=_mosaic_params(io_bytes),
    )(xt, w3, bias.reshape(D, 1), gamma_t, beta_t, mask_l, mask_r, avg_mat, exp_mat)

    out = jnp.transpose(out_flat.reshape(D, b_pad, L), (1, 0, 2))   # (b_pad, D, L)
    return out[:B] if b_pad != B else out


def learnable_positional_encoder(x, weight, bias, gamma, beta, *, block_batch=None):
    """x: (B, d_model, L) f32 with L == d_model; weight: (d_model, d_model, 3)."""
    B, D, L = x.shape
    assert L == D, "PyTorch module requires length == d_model for LayerNorm([d_model])"
    assert weight.shape == (D, D, KERNEL_SIZE)
    w3 = jnp.transpose(weight, (2, 0, 1))          # (3, D, D); w3[k] = weight[:, :, k]
    if L % 128 == 0:
        return _forward_natural(x, w3, bias, gamma, beta, block_batch)
    return _forward_packed(x, w3, bias, gamma, beta, block_batch)


def _reference(x, weight, bias, gamma, beta):
    L = x.shape[-1]
    xp = jnp.pad(x, ((0, 0), (0, 0), (1, 1)))
    conv = bias[None, :, None]
    for k in range(KERNEL_SIZE):
        conv = conv + jnp.einsum("oi,bil->bol", weight[:, :, k], xp[:, :, k:k + L])
    y = jnp.maximum(conv, 0.0) + x
    mean = jnp.mean(y, axis=-1, keepdims=True)
    var = jnp.mean((y - mean) ** 2, axis=-1, keepdims=True)
    return (y - mean) / jnp.sqrt(var + EPS) * gamma + beta


if __name__ == "__main__":
    def run_case(batch, d_model, block_batch, key):
        kx, kw, kb, kg, kbe = jax.random.split(key, 5)
        x = jax.random.normal(kx, (batch, d_model, d_model), dtype=jnp.float32)
        fan_in = d_model * KERNEL_SIZE
        lim = 1.0 / math.sqrt(fan_in)
        weight = jax.random.uniform(kw, (d_model, d_model, KERNEL_SIZE),
                                    minval=-lim, maxval=lim, dtype=jnp.float32)
        bias = jax.random.uniform(kb, (d_model,), minval=-lim, maxval=lim,
                                  dtype=jnp.float32)
        gamma = 1.0 + 0.1 * jax.random.normal(kg, (d_model,), dtype=jnp.float32)
        beta = 0.1 * jax.random.normal(kbe, (d_model,), dtype=jnp.float32)

        out = learnable_positional_encoder(x, weight, bias, gamma, beta,
                                           block_batch=block_batch)
        out = jax.block_until_ready(out)
        ref = _reference(x, weight, bias, gamma, beta)
        assert out.shape == x.shape
        assert jnp.allclose(out, ref, atol=1e-4, rtol=1e-4), \
            f"mismatch vs reference at d_model={d_model}"

    k1, k2 = jax.random.split(jax.random.PRNGKey(0))
    # Lane-packed path (L=32 not a multiple of 128); batch not divisible by
    # block_batch exercises the zero-padded samples and a 2-block parallel grid.
    run_case(batch=6, d_model=32, block_batch=4, key=k1)
    # Natural-layout path (L=128, no host-side transposes); 3 parallel blocks,
    # one zero-padded sample that gets sliced off.
    run_case(batch=5, d_model=128, block_batch=2, key=k2)
    print("KERNEL_OK")
</pallas_src>

<mosaic_0001>
module attributes {stable_mosaic.version = 11 : i64} {
  func.func @_lpe_kernel_packed(%arg0: i32, %arg1: memref<32x128xf32, #tpu.memory_space<vmem>>, %arg2: memref<3x32x32xf32, #tpu.memory_space<vmem>>, %arg3: memref<32x1xf32, #tpu.memory_space<vmem>>, %arg4: memref<1x128xf32, #tpu.memory_space<vmem>>, %arg5: memref<1x128xf32, #tpu.memory_space<vmem>>, %arg6: memref<1x128xf32, #tpu.memory_space<vmem>>, %arg7: memref<1x128xf32, #tpu.memory_space<vmem>>, %arg8: memref<128x4xf32, #tpu.memory_space<vmem>>, %arg9: memref<4x128xf32, #tpu.memory_space<vmem>>, %arg10: memref<32x128xf32, #tpu.memory_space<vmem>>) attributes {dimension_semantics = [#tpu.dimension_semantics<parallel>], iteration_bounds = array<i64: 2>, scalar_prefetch = 0 : i64, scratch_operands = 0 : i64, tpu.core_type = #tpu.core_type<tc>, window_params = [{transform_indices = @transform_0, window_bounds = array<i64: 32, 128>}, {pipeline_mode = #tpu.pipeline_mode<synchronous>, transform_indices = @transform_1, window_bounds = array<i64: 3, 32, 32>}, {pipeline_mode = #tpu.pipeline_mode<synchronous>, transform_indices = @transform_2, window_bounds = array<i64: 32, 1>}, {pipeline_mode = #tpu.pipeline_mode<synchronous>, transform_indices = @transform_3, window_bounds = array<i64: 1, 128>}, {pipeline_mode = #tpu.pipeline_mode<synchronous>, transform_indices = @transform_4, window_bounds = array<i64: 1, 128>}, {pipeline_mode = #tpu.pipeline_mode<synchronous>, transform_indices = @transform_5, window_bounds = array<i64: 1, 128>}, {pipeline_mode = #tpu.pipeline_mode<synchronous>, transform_indices = @transform_6, window_bounds = array<i64: 1, 128>}, {pipeline_mode = #tpu.pipeline_mode<synchronous>, transform_indices = @transform_7, window_bounds = array<i64: 128, 4>}, {pipeline_mode = #tpu.pipeline_mode<synchronous>, transform_indices = @transform_8, window_bounds = array<i64: 4, 128>}, {transform_indices = @transform_9, window_bounds = array<i64: 32, 128>}]} {
    %c0 = arith.constant 0 : index
    %c0_0 = arith.constant 0 : index
    %0 = vector.load %arg1[%c0, %c0_0] : memref<32x128xf32, #tpu.memory_space<vmem>>, vector<32x128xf32>
    %c1 = arith.constant 1 : index
    %c0_1 = arith.constant 0 : index
    %c0_2 = arith.constant 0 : index
    %1 = vector.load %arg2[%c1, %c0_1, %c0_2] : memref<3x32x32xf32, #tpu.memory_space<vmem>>, vector<1x32x32xf32>
    %2 = vector.shape_cast %1 : vector<1x32x32xf32> to vector<32x32xf32>
    %cst = arith.constant dense<0.000000e+00> : vector<32x128xf32>
    %3 = tpu.matmul %2, %0, %cst {dimension_numbers = #tpu.dot_dimension_numbers<[1], [0], [0], [1], [0, 0, 1, 1], [], []>} : vector<32x32xf32>, vector<32x128xf32>, vector<32x128xf32> -> vector<32x128xf32>
    %c0_3 = arith.constant 0 : index
    %c0_4 = arith.constant 0 : index
    %c0_5 = arith.constant 0 : index
    %4 = vector.load %arg2[%c0_3, %c0_4, %c0_5] : memref<3x32x32xf32, #tpu.memory_space<vmem>>, vector<1x32x32xf32>
    %5 = vector.shape_cast %4 : vector<1x32x32xf32> to vector<32x32xf32>
    %cst_6 = arith.constant dense<0.000000e+00> : vector<32x128xf32>
    %6 = tpu.matmul %5, %0, %cst_6 {dimension_numbers = #tpu.dot_dimension_numbers<[1], [0], [0], [1], [0, 0, 1, 1], [], []>} : vector<32x32xf32>, vector<32x128xf32>, vector<32x128xf32> -> vector<32x128xf32>
    %c1_i32 = arith.constant 1 : i32
    %7 = tpu.dynamic_rotate %6 by %c1_i32 dim 1 : vector<32x128xf32>, i32 -> vector<32x128xf32>
    %c0_7 = arith.constant 0 : index
    %c0_8 = arith.constant 0 : index
    %8 = vector.load %arg6[%c0_7, %c0_8] : memref<1x128xf32, #tpu.memory_space<vmem>>, vector<1x128xf32>
    %9 = vector.broadcast %8 : vector<1x128xf32> to vector<32x128xf32>
    %10 = arith.mulf %7, %9 : vector<32x128xf32>
    %11 = arith.addf %3, %10 : vector<32x128xf32>
    %c2 = arith.constant 2 : index
    %c0_9 = arith.constant 0 : index
    %c0_10 = arith.constant 0 : index
    %12 = vector.load %arg2[%c2, %c0_9, %c0_10] : memref<3x32x32xf32, #tpu.memory_space<vmem>>, vector<1x32x32xf32>
    %13 = vector.shape_cast %12 : vector<1x32x32xf32> to vector<32x32xf32>
    %cst_11 = arith.constant dense<0.000000e+00> : vector<32x128xf32>
    %14 = tpu.matmul %13, %0, %cst_11 {dimension_numbers = #tpu.dot_dimension_numbers<[1], [0], [0], [1], [0, 0, 1, 1], [], []>} : vector<32x32xf32>, vector<32x128xf32>, vector<32x128xf32> -> vector<32x128xf32>
    %c127_i32 = arith.constant 127 : i32
    %15 = tpu.dynamic_rotate %14 by %c127_i32 dim 1 : vector<32x128xf32>, i32 -> vector<32x128xf32>
    %c0_12 = arith.constant 0 : index
    %c0_13 = arith.constant 0 : index
    %16 = vector.load %arg7[%c0_12, %c0_13] : memref<1x128xf32, #tpu.memory_space<vmem>>, vector<1x128xf32>
    %17 = vector.broadcast %16 : vector<1x128xf32> to vector<32x128xf32>
    %18 = arith.mulf %15, %17 : vector<32x128xf32>
    %19 = arith.addf %11, %18 : vector<32x128xf32>
    %c0_14 = arith.constant 0 : index
    %c0_15 = arith.constant 0 : index
    %20 = vector.load %arg3[%c0_14, %c0_15] : memref<32x1xf32, #tpu.memory_space<vmem>>, vector<32x1xf32>
    %21 = vector.broadcast %20 : vector<32x1xf32> to vector<32x128xf32>
    %22 = arith.addf %19, %21 : vector<32x128xf32>
    %cst_16 = arith.constant 0.000000e+00 : f32
    %23 = vector.broadcast %cst_16 : f32 to vector<32x128xf32>
    %24 = arith.maximumf %22, %23 : vector<32x128xf32>
    %25 = arith.addf %24, %0 : vector<32x128xf32>
    %c0_17 = arith.constant 0 : index
    %c0_18 = arith.constant 0 : index
    %26 = vector.load %arg8[%c0_17, %c0_18] : memref<128x4xf32, #tpu.memory_space<vmem>>, vector<128x4xf32>
    %cst_19 = arith.constant dense<0.000000e+00> : vector<32x4xf32>
    %27 = tpu.matmul %25, %26, %cst_19 {dimension_numbers = #tpu.dot_dimension_numbers<[1], [0], [0], [1], [0, 0, 1, 1], [], []>} : vector<32x128xf32>, vector<128x4xf32>, vector<32x4xf32> -> vector<32x4xf32>
    %28 = arith.mulf %25, %25 : vector<32x128xf32>
    %c0_20 = arith.constant 0 : index
    %c0_21 = arith.constant 0 : index
    %29 = vector.load %arg8[%c0_20, %c0_21] : memref<128x4xf32, #tpu.memory_space<vmem>>, vector<128x4xf32>
    %cst_22 = arith.constant dense<0.000000e+00> : vector<32x4xf32>
    %30 = tpu.matmul %28, %29, %cst_22 {dimension_numbers = #tpu.dot_dimension_numbers<[1], [0], [0], [1], [0, 0, 1, 1], [], []>} : vector<32x128xf32>, vector<128x4xf32>, vector<32x4xf32> -> vector<32x4xf32>
    %31 = arith.mulf %27, %27 : vector<32x4xf32>
    %32 = arith.subf %30, %31 : vector<32x4xf32>
    %cst_23 = arith.constant 0.000000e+00 : f32
    %33 = vector.broadcast %cst_23 : f32 to vector<32x4xf32>
    %34 = arith.maximumf %32, %33 : vector<32x4xf32>
    %cst_24 = arith.constant 9.99999997E-7 : f32
    %35 = vector.broadcast %cst_24 : f32 to vector<32x4xf32>
    %36 = arith.addf %34, %35 : vector<32x4xf32>
    %37 = math.rsqrt %36 : vector<32x4xf32>
    %c0_25 = arith.constant 0 : index
    %c0_26 = arith.constant 0 : index
    %38 = vector.load %arg9[%c0_25, %c0_26] : memref<4x128xf32, #tpu.memory_space<vmem>>, vector<4x128xf32>
    %cst_27 = arith.constant dense<0.000000e+00> : vector<32x128xf32>
    %39 = tpu.matmul %27, %38, %cst_27 {dimension_numbers = #tpu.dot_dimension_numbers<[1], [0], [0], [1], [0, 0, 1, 1], [], []>} : vector<32x4xf32>, vector<4x128xf32>, vector<32x128xf32> -> vector<32x128xf32>
    %c0_28 = arith.constant 0 : index
    %c0_29 = arith.constant 0 : index
    %40 = vector.load %arg9[%c0_28, %c0_29] : memref<4x128xf32, #tpu.memory_space<vmem>>, vector<4x128xf32>
    %cst_30 = arith.constant dense<0.000000e+00> : vector<32x128xf32>
    %41 = tpu.matmul %37, %40, %cst_30 {dimension_numbers = #tpu.dot_dimension_numbers<[1], [0], [0], [1], [0, 0, 1, 1], [], []>} : vector<32x4xf32>, vector<4x128xf32>, vector<32x128xf32> -> vector<32x128xf32>
    %42 = arith.subf %25, %39 : vector<32x128xf32>
    %43 = arith.mulf %42, %41 : vector<32x128xf32>
    %c0_31 = arith.constant 0 : index
    %c0_32 = arith.constant 0 : index
    %44 = vector.load %arg4[%c0_31, %c0_32] : memref<1x128xf32, #tpu.memory_space<vmem>>, vector<1x128xf32>
    %45 = vector.broadcast %44 : vector<1x128xf32> to vector<32x128xf32>
    %46 = arith.mulf %43, %45 : vector<32x128xf32>
    %c0_33 = arith.constant 0 : index
    %c0_34 = arith.constant 0 : index
    %47 = vector.load %arg5[%c0_33, %c0_34] : memref<1x128xf32, #tpu.memory_space<vmem>>, vector<1x128xf32>
    %48 = vector.broadcast %47 : vector<1x128xf32> to vector<32x128xf32>
    %49 = arith.addf %46, %48 : vector<32x128xf32>
    %c0_35 = arith.constant 0 : index
    %c0_36 = arith.constant 0 : index
    %50 = vector.load %arg10[%c0_35, %c0_36] : memref<32x128xf32, #tpu.memory_space<vmem>>, vector<32x128xf32>
    tpu.vector_store %arg10[%c0_35, %c0_36], %49 {strides = array<i32>} : memref<32x128xf32, #tpu.memory_space<vmem>>, vector<32x128xf32>,
    return
  }
  func.func @transform_0(%arg0: i32) -> (i32, i32) {
    %c0_i32 = arith.constant 0 : i32
    %c0_i32_0 = arith.constant 0 : i32
    return %c0_i32, %arg0 : i32, i32
  }
  func.func @transform_1(%arg0: i32) -> (i32, i32, i32) {
    %c0_i32 = arith.constant 0 : i32
    %c0_i32_0 = arith.constant 0 : i32
    %c0_i32_1 = arith.constant 0 : i32
    %c0_i32_2 = arith.constant 0 : i32
    return %c0_i32, %c0_i32_0, %c0_i32_1 : i32, i32, i32
  }
  func.func @transform_2(%arg0: i32) -> (i32, i32) {
    %c0_i32 = arith.constant 0 : i32
    %c0_i32_0 = arith.constant 0 : i32
    %c0_i32_1 = arith.constant 0 : i32
    return %c0_i32, %c0_i32_0 : i32, i32
  }
  func.func @transform_3(%arg0: i32) -> (i32, i32) {
    %c0_i32 = arith.constant 0 : i32
    %c0_i32_0 = arith.constant 0 : i32
    %c0_i32_1 = arith.constant 0 : i32
    return %c0_i32, %c0_i32_0 : i32, i32
  }
  func.func @transform_4(%arg0: i32) -> (i32, i32) {
    %c0_i32 = arith.constant 0 : i32
    %c0_i32_0 = arith.constant 0 : i32
    %c0_i32_1 = arith.constant 0 : i32
    return %c0_i32, %c0_i32_0 : i32, i32
  }
  func.func @transform_5(%arg0: i32) -> (i32, i32) {
    %c0_i32 = arith.constant 0 : i32
    %c0_i32_0 = arith.constant 0 : i32
    %c0_i32_1 = arith.constant 0 : i32
    return %c0_i32, %c0_i32_0 : i32, i32
  }
  func.func @transform_6(%arg0: i32) -> (i32, i32) {
    %c0_i32 = arith.constant 0 : i32
    %c0_i32_0 = arith.constant 0 : i32
    %c0_i32_1 = arith.constant 0 : i32
    return %c0_i32, %c0_i32_0 : i32, i32
  }
  func.func @transform_7(%arg0: i32) -> (i32, i32) {
    %c0_i32 = arith.constant 0 : i32
    %c0_i32_0 = arith.constant 0 : i32
    %c0_i32_1 = arith.constant 0 : i32
    return %c0_i32, %c0_i32_0 : i32, i32
  }
  func.func @transform_8(%arg0: i32) -> (i32, i32) {
    %c0_i32 = arith.constant 0 : i32
    %c0_i32_0 = arith.constant 0 : i32
    %c0_i32_1 = arith.constant 0 : i32
    return %c0_i32, %c0_i32_0 : i32, i32
  }
  func.func @transform_9(%arg0: i32) -> (i32, i32) {
    %c0_i32 = arith.constant 0 : i32
    %c0_i32_0 = arith.constant 0 : i32
    return %c0_i32, %arg0 : i32, i32
  }
}

</mosaic_0001>

<llo_original>
// kernel: tpu_custom_call.1
$region0: #{tpu_custom_call.1}
  #allocation0 [shape = 'u32[]', space=smem, size = 0x4, offset = 0x4, fixed_abs, tag = 'smem constant byte address 0x4 - core index']
  #allocation1 [shape = 'u32[72,128]{1,0:T(1,128)}', space=vmem, size = 0x9000, scoped, tag = 'internal scratch']
  %s0 = inlined_call_operand.vmem [shape: f32[32,256], index: 0, kind: input, shape index: {}]
  %s1 = inlined_call_operand.vmem [shape: f32[3,32,32], index: 1, kind: input, shape index: {}]
  %s2 = inlined_call_operand.vmem [shape: f32[32,1], index: 2, kind: input, shape index: {}]
  %s3 = inlined_call_operand.vmem [shape: f32[1,128], index: 3, kind: input, shape index: {}]
  %s4 = inlined_call_operand.hbm [shape: f32[1,128], index: 4, kind: input, shape index: {}]
  %s5 = inlined_call_operand.hbm [shape: f32[1,128], index: 5, kind: input, shape index: {}]
  %s6 = inlined_call_operand.hbm [shape: f32[1,128], index: 6, kind: input, shape index: {}]
  %s7 = inlined_call_operand.vmem [shape: f32[128,4], index: 7, kind: input, shape index: {}]
  %s8 = inlined_call_operand.vmem [shape: f32[4,128], index: 8, kind: input, shape index: {}]
  %s9 = inlined_call_operand.hbm [shape: f32[32,256], index: 9, kind: output, shape index: {}]
  %s10 = sld [smem:[#allocation0]]
  $region119: #{tpu_custom_call.1} parent=0
    _
  %s12 = ssub.s32 1, %s10
  %s13 = scalar_select 0, %s12, %s10
  $region1: #{tpu_custom_call.1} parent=0
    #allocation2 [shape = 'u8[32768]{0}', space=vmem, size = 0x8000, scoped, tag = 'input window, operand 0']
    #allocation3 [shape = 'u8[512]{0}', space=vmem, size = 0x400, scoped, tag = 'input window, operand 4, single buffered']
    #allocation4 [shape = 's32[2]{0}', space=sflag, size = 0x8, scoped, tag = 'scoped memory for tpu_custom_call.1']
    #allocation5 [shape = 's32[2]{0}', space=sflag, size = 0x8, scoped, tag = 'scoped memory for tpu_custom_call.1']
    #allocation6 [shape = 'u8[512]{0}', space=vmem, size = 0x400, scoped, tag = 'input window, operand 5, single buffered']
    #allocation7 [shape = 's32[1]{0}', space=sflag, size = 0x4, scoped, tag = 'scoped memory for tpu_custom_call.1']
    #allocation8 [shape = 'u8[512]{0}', space=vmem, size = 0x400, scoped, tag = 'input window, operand 6, single buffered']
    #allocation9 [shape = 'u8[32768]{0}', space=vmem, size = 0x8000, scoped, tag = 'output window, operand 0']
    %14 = vsyncpa [#allocation4], 0
    %15 = vsyncpa [#allocation7], 0
    %16 = vsyncpa [#allocation5], 0
    %s17 = scalar_lea.sflag [#allocation5], 1
    %18 = vsyncpa %s17, 0
    loop: start=0, step=1, limit=4
    $region2: #{tpu_custom_call.1} parent=1 // loop_pre_header
      _
    $region3: #{tpu_custom_call.1} parent=1 // loop_header
      %s20 = sphi 0, %s24
      %p21 = scmp.ge.s32.totalorder %s20, 4
      %s30 = sphi 0, %s32
      %s33 = sphi 0, %s30
      %s34 = sphi 0, %s33
      %s50 = sphi 0, %s34
      %s54 = sphi 0, %s54
      %s56 = sphi 0, %s54
      %s57 = sphi 0, %s56
      %s71 = sphi 0, %s57
      %s75 = sphi 0, %s75
      %s77 = sphi 0, %s75
      %s78 = sphi 0, %s77
      %s92 = sphi 0, %s78
      %s96 = sphi 0, %s96
      %s98 = sphi 0, %s96
      %s99 = sphi 0, %s98
      %s113 = sphi 0, %s99
      %s117 = sphi 0, %s117
      %s119 = sphi 0, %s117
      %s120 = sphi 0, %s119
      %s134 = sphi 0, %s120
      %s138 = sphi 0, %s138
      %s140 = sphi 0, %s138
      %s141 = sphi 0, %s140
      %s155 = sphi 0, %s141
      %s159 = sphi 0, %s159
      %s161 = sphi 0, %s159
      %s162 = sphi 0, %s161
      %s176 = sphi 0, %s162
      %s180 = sphi 0, %s180
      %s182 = sphi 0, %s180
      %s183 = sphi 0, %s182
      %s197 = sphi 0, %s183
      %s201 = sphi 0, %s201
      %s203 = sphi 0, %s201
      %s204 = sphi 0, %s203
      %s218 = sphi 0, %s204
      %s224 = sphi 0, %s226
      %s227 = sphi 0, %s224
      %s228 = sphi 0, %s227
      %s244 = sphi 0, %s228
    $region4: #{tpu_custom_call.1} parent=1 // loop_header_branch
      %23 = sbr.rel (%p21) target = $region8
    $region5: #{tpu_custom_call.1} parent=1 // loop_body
      %s25 = ssub.s32 %s20, 1
      %s26 = ssub.s32 %s20, 2
      %s27 = sadd.s32 %s20, 1
      %s28 = ssub.s32 %s20, %s27
      %p29 = scmp.eq.s32.totalorder %s28, 0
      %s31 = sadd.s32 %s30, 1
      %s32 = scalar_select %p29, %s30, %s31
      %p35 = pneg %p29
      %p36 = scmp.eq.s32.totalorder %s20, 1
      %p37 = por %p35, %p36
      %p38 = scmp.ne.s32.totalorder %s30, %s33
      %p39 = scmp.eq.s32.totalorder %s20, 0
      %p40 = por %p38, %p39
      %p41 = scmp.ne.s32.totalorder %s30, %s33
      %p42 = scmp.eq.s32.totalorder %s25, 1
      %p43 = por %p41, %p42
      %p44 = scmp.ne.s32.totalorder %s33, %s34
      %p45 = scmp.eq.s32.totalorder %s25, 0
      %p46 = por %p44, %p45
      %p47 = scmp.ne.s32.totalorder %s33, %s34
      %p48 = scmp.eq.s32.totalorder %s26, 1
      %p49 = por %p47, %p48
      %p51 = scmp.ne.s32.totalorder %s34, %s50
      %p52 = scmp.eq.s32.totalorder %s26, 0
      %p53 = por %p51, %p52
      %s55 = sadd.s32 %s54, 1
      %p58 = scmp.eq.s32.totalorder %s20, 1
      %p59 = scmp.ne.s32.totalorder %s54, %s56
      %p60 = scmp.eq.s32.totalorder %s20, 0
      %p61 = por %p59, %p60
      %p62 = scmp.ne.s32.totalorder %s54, %s56
      %p63 = scmp.eq.s32.totalorder %s25, 1
      %p64 = por %p62, %p63
      %p65 = scmp.ne.s32.totalorder %s56, %s57
      %p66 = scmp.eq.s32.totalorder %s25, 0
      %p67 = por %p65, %p66
      %p68 = scmp.ne.s32.totalorder %s56, %s57
      %p69 = scmp.eq.s32.totalorder %s26, 1
      %p70 = por %p68, %p69
      %p72 = scmp.ne.s32.totalorder %s57, %s71
      %p73 = scmp.eq.s32.totalorder %s26, 0
      %p74 = por %p72, %p73
      %s76 = sadd.s32 %s75, 1
      %p79 = scmp.eq.s32.totalorder %s20, 1
      %p80 = scmp.ne.s32.totalorder %s75, %s77
      %p81 = scmp.eq.s32.totalorder %s20, 0
      %p82 = por %p80, %p81
      %p83 = scmp.ne.s32.totalorder %s75, %s77
      %p84 = scmp.eq.s32.totalorder %s25, 1
      %p85 = por %p83, %p84
      %p86 = scmp.ne.s32.totalorder %s77, %s78
      %p87 = scmp.eq.s32.totalorder %s25, 0
      %p88 = por %p86, %p87
      %p89 = scmp.ne.s32.totalorder %s77, %s78
      %p90 = scmp.eq.s32.totalorder %s26, 1
      %p91 = por %p89, %p90
      %p93 = scmp.ne.s32.totalorder %s78, %s92
      %p94 = scmp.eq.s32.totalorder %s26, 0
      %p95 = por %p93, %p94
      %s97 = sadd.s32 %s96, 1
      %p100 = scmp.eq.s32.totalorder %s20, 1
      %p101 = scmp.ne.s32.totalorder %s96, %s98
      %p102 = scmp.eq.s32.totalorder %s20, 0
      %p103 = por %p101, %p102
      %p104 = scmp.ne.s32.totalorder %s96, %s98
      %p105 = scmp.eq.s32.totalorder %s25, 1
      %p106 = por %p104, %p105
      %p107 = scmp.ne.s32.totalorder %s98, %s99
      %p108 = scmp.eq.s32.totalorder %s25, 0
      %p109 = por %p107, %p108
      %p110 = scmp.ne.s32.totalorder %s98, %s99
      %p111 = scmp.eq.s32.totalorder %s26, 1
      %p112 = por %p110, %p111
      %p114 = scmp.ne.s32.totalorder %s99, %s113
      %p115 = scmp.eq.s32.totalorder %s26, 0
      %p116 = por %p114, %p115
      %s118 = sadd.s32 %s117, 1
      %p121 = scmp.eq.s32.totalorder %s20, 1
      %p122 = scmp.ne.s32.totalorder %s117, %s119
      %p123 = scmp.eq.s32.totalorder %s20, 0
      %p124 = por %p122, %p123
      %p125 = scmp.ne.s32.totalorder %s117, %s119
      %p126 = scmp.eq.s32.totalorder %s25, 1
      %p127 = por %p125, %p126
      %p128 = scmp.ne.s32.totalorder %s119, %s120
      %p129 = scmp.eq.s32.totalorder %s25, 0
      %p130 = por %p128, %p129
      %p131 = scmp.ne.s32.totalorder %s119, %s120
      %p132 = scmp.eq.s32.totalorder %s26, 1
      %p133 = por %p131, %p132
      %p135 = scmp.ne.s32.totalorder %s120, %s134
      %p136 = scmp.eq.s32.totalorder %s26, 0
      %p137 = por %p135, %p136
      %s139 = sadd.s32 %s138, 1
      %p142 = scmp.eq.s32.totalorder %s20, 1
      %p143 = scmp.ne.s32.totalorder %s138, %s140
      %p144 = scmp.eq.s32.totalorder %s20, 0
      %p145 = por %p143, %p144
      %p146 = scmp.ne.s32.totalorder %s138, %s140
      %p147 = scmp.eq.s32.totalorder %s25, 1
      %p148 = por %p146, %p147
      %p149 = scmp.ne.s32.totalorder %s140, %s141
      %p150 = scmp.eq.s32.totalorder %s25, 0
      %p151 = por %p149, %p150
      %p152 = scmp.ne.s32.totalorder %s140, %s141
      %p153 = scmp.eq.s32.totalorder %s26, 1
      %p154 = por %p152, %p153
      %p156 = scmp.ne.s32.totalorder %s141, %s155
      %p157 = scmp.eq.s32.totalorder %s26, 0
      %p158 = por %p156, %p157
      %s160 = sadd.s32 %s159, 1
      %p163 = scmp.eq.s32.totalorder %s20, 1
      %p164 = scmp.ne.s32.totalorder %s159, %s161
      %p165 = scmp.eq.s32.totalorder %s20, 0
      %p166 = por %p164, %p165
      %p167 = scmp.ne.s32.totalorder %s159, %s161
      %p168 = scmp.eq.s32.totalorder %s25, 1
      %p169 = por %p167, %p168
      %p170 = scmp.ne.s32.totalorder %s161, %s162
      %p171 = scmp.eq.s32.totalorder %s25, 0
      %p172 = por %p170, %p171
      %p173 = scmp.ne.s32.totalorder %s161, %s162
      %p174 = scmp.eq.s32.totalorder %s26, 1
      %p175 = por %p173, %p174
      %p177 = scmp.ne.s32.totalorder %s162, %s176
      %p178 = scmp.eq.s32.totalorder %s26, 0
      %p179 = por %p177, %p178
      %s181 = sadd.s32 %s180, 1
      %p184 = scmp.eq.s32.totalorder %s20, 1
      %p185 = scmp.ne.s32.totalorder %s180, %s182
      %p186 = scmp.eq.s32.totalorder %s20, 0
      %p187 = por %p185, %p186
      %p188 = scmp.ne.s32.totalorder %s180, %s182
      %p189 = scmp.eq.s32.totalorder %s25, 1
      %p190 = por %p188, %p189
      %p191 = scmp.ne.s32.totalorder %s182, %s183
      %p192 = scmp.eq.s32.totalorder %s25, 0
      %p193 = por %p191, %p192
      %p194 = scmp.ne.s32.totalorder %s182, %s183
      %p195 = scmp.eq.s32.totalorder %s26, 1
      %p196 = por %p194, %p195
      %p198 = scmp.ne.s32.totalorder %s183, %s197
      %p199 = scmp.eq.s32.totalorder %s26, 0
      %p200 = por %p198, %p199
      %s202 = sadd.s32 %s201, 1
      %p205 = scmp.eq.s32.totalorder %s20, 1
      %p206 = scmp.ne.s32.totalorder %s201, %s203
      %p207 = scmp.eq.s32.totalorder %s20, 0
      %p208 = por %p206, %p207
      %p209 = scmp.ne.s32.totalorder %s201, %s203
      %p210 = scmp.eq.s32.totalorder %s25, 1
      %p211 = por %p209, %p210
      %p212 = scmp.ne.s32.totalorder %s203, %s204
      %p213 = scmp.eq.s32.totalorder %s25, 0
      %p214 = por %p212, %p213
      %p215 = scmp.ne.s32.totalorder %s203, %s204
      %p216 = scmp.eq.s32.totalorder %s26, 1
      %p217 = por %p215, %p216
      %p219 = scmp.ne.s32.totalorder %s204, %s218
      %p220 = scmp.eq.s32.totalorder %s26, 0
      %p221 = por %p219, %p220
      %s222 = ssub.s32 %s20, %s27
      %p223 = scmp.eq.s32.totalorder %s222, 0
      %s225 = sadd.s32 %s224, 1
      %s226 = scalar_select %p223, %s224, %s225
      %p229 = pneg %p223
      %p230 = scmp.eq.s32.totalorder %s20, 1
      %p231 = por %p229, %p230
      %p232 = scmp.ne.s32.totalorder %s224, %s227
      %p233 = scmp.eq.s32.totalorder %s20, 0
      %p234 = por %p232, %p233
      %p235 = scmp.ne.s32.totalorder %s224, %s227
      %p236 = scmp.eq.s32.totalorder %s25, 1
      %p237 = por %p235, %p236
      %p238 = scmp.ne.s32.totalorder %s227, %s228
      %p239 = scmp.eq.s32.totalorder %s25, 0
      %p240 = por %p238, %p239
      %p241 = scmp.ne.s32.totalorder %s227, %s228
      %p242 = scmp.eq.s32.totalorder %s26, 1
      %p243 = por %p241, %p242
      %p245 = scmp.ne.s32.totalorder %s228, %s244
      %p246 = scmp.eq.s32.totalorder %s26, 0
      %p247 = por %p245, %p246
      %p248 = scmp.le.s32.totalorder 1, %s20
      %p249 = scmp.lt.s32.totalorder %s20, 3
      %p250 = pnand %p248, %p249
      %p251 = pneg %p250
      // Predicated region
      $region9: #{tpu_custom_call.1} parent=5 // pred_check
        _
      $region10: #{tpu_custom_call.1} parent=5 // pred_check_branch
        %253 = sbr.rel (%p250) target = $region12
      $region11: #{tpu_custom_call.1} parent=5 // pred_region
        %s254 = ssub.s32 %s20, 1
        // Predicated region
        $region13: #{tpu_custom_call.1} parent=11 // pred_check
          %p255 = pneg %p67
        $region14: #{tpu_custom_call.1} parent=11 // pred_check_branch
          %257 = sbr.rel (%p255) target = $region16
        $region15: #{tpu_custom_call.1} parent=11 // pred_region
          _
        $region16: #{tpu_custom_call.1} parent=11 // pred_fallthru
          _
        // Predicated region
        $region17: #{tpu_custom_call.1} parent=11 // pred_check
          %p258 = pneg %p88
        $region18: #{tpu_custom_call.1} parent=11 // pred_check_branch
          %260 = sbr.rel (%p258) target = $region20
        $region19: #{tpu_custom_call.1} parent=11 // pred_region
          _
        $region20: #{tpu_custom_call.1} parent=11 // pred_fallthru
          _
        // Predicated region
        $region21: #{tpu_custom_call.1} parent=11 // pred_check
          %p261 = pneg %p109
        $region22: #{tpu_custom_call.1} parent=11 // pred_check_branch
          %263 = sbr.rel (%p261) target = $region24
        $region23: #{tpu_custom_call.1} parent=11 // pred_region
          _
        $region24: #{tpu_custom_call.1} parent=11 // pred_fallthru
          _
        // Predicated region
        $region25: #{tpu_custom_call.1} parent=11 // pred_check
          %p264 = pneg %p130
        $region26: #{tpu_custom_call.1} parent=11 // pred_check_branch
          %266 = sbr.rel (%p264) target = $region28
        $region27: #{tpu_custom_call.1} parent=11 // pred_region
          %268 = vsyncadd [#allocation4], 0
          %s270 = sshll.u32 %s4, 4
          %s271 = int_to_ptr.hbm [resolvable:$true] %s270
          %s272 = sshll.u32 [#allocation3], 4
          %s273 = int_to_ptr.vmem [resolvable:$true] %s272
          %275 = dma.hbm_to_vmem [thread:$0]  %s271, 16, %s273, [#allocation4]
        $region28: #{tpu_custom_call.1} parent=11 // pred_fallthru
          _
        // Predicated region
        $region29: #{tpu_custom_call.1} parent=11 // pred_check
          %p276 = pneg %p151
        $region30: #{tpu_custom_call.1} parent=11 // pred_check_branch
          %278 = sbr.rel (%p276) target = $region32
        $region31: #{tpu_custom_call.1} parent=11 // pred_region
          %280 = vsyncadd [#allocation7], 0
          %s282 = sshll.u32 %s5, 4
          %s283 = int_to_ptr.hbm [resolvable:$true] %s282
          %s284 = sshll.u32 [#allocation6], 4
          %s285 = int_to_ptr.vmem [resolvable:$true] %s284
          %287 = dma.hbm_to_vmem [thread:$0]  %s283, 16, %s285, [#allocation7]
        $region32: #{tpu_custom_call.1} parent=11 // pred_fallthru
          _
        // Predicated region
        $region33: #{tpu_custom_call.1} parent=11 // pred_check
          %p288 = pneg %p172
        $region34: #{tpu_custom_call.1} parent=11 // pred_check_branch
          %290 = sbr.rel (%p288) target = $region36
        $region35: #{tpu_custom_call.1} parent=11 // pred_region
          %292 = vsyncadd [#allocation7], 0
          %s294 = sshll.u32 %s6, 4
          %s295 = int_to_ptr.hbm [resolvable:$true] %s294
          %s296 = sshll.u32 [#allocation8], 4
          %s297 = int_to_ptr.vmem [resolvable:$true] %s296
          %299 = dma.hbm_to_vmem [thread:$0]  %s295, 16, %s297, [#allocation7]
        $region36: #{tpu_custom_call.1} parent=11 // pred_fallthru
          _
        // Predicated region
        $region37: #{tpu_custom_call.1} parent=11 // pred_check
          %p300 = pneg %p193
        $region38: #{tpu_custom_call.1} parent=11 // pred_check_branch
          %302 = sbr.rel (%p300) target = $region40
        $region39: #{tpu_custom_call.1} parent=11 // pred_region
          _
        $region40: #{tpu_custom_call.1} parent=11 // pred_fallthru
          _
        // Predicated region
        $region41: #{tpu_custom_call.1} parent=11 // pred_check
          %p303 = pneg %p214
        $region42: #{tpu_custom_call.1} parent=11 // pred_check_branch
          %305 = sbr.rel (%p303) target = $region44
        $region43: #{tpu_custom_call.1} parent=11 // pred_region
          _
        $region44: #{tpu_custom_call.1} parent=11 // pred_fallthru
          _
      $region12: #{tpu_custom_call.1} parent=5 // pred_fallthru
        _
      %p306 = scmp.lt.s32.totalorder %s20, 2
      // Predicated region
      $region45: #{tpu_custom_call.1} parent=5 // pred_check
        %p307 = pneg %p306
      $region46: #{tpu_custom_call.1} parent=5 // pred_check_branch
        %309 = sbr.rel (%p307) target = $region48
      $region47: #{tpu_custom_call.1} parent=5 // pred_region
        // Predicated region
        $region49: #{tpu_custom_call.1} parent=47 // pred_check
          %p310 = pneg %p40
        $region50: #{tpu_custom_call.1} parent=47 // pred_check_branch
          %312 = sbr.rel (%p310) target = $region52
        $region51: #{tpu_custom_call.1} parent=47 // pred_region
          %s313 = sand.u32 %s30, 1
          %s314 = sand.u32 %s30, 1
          %s315 = smul.addr %s314, 32
          %s316 = scalar_lea.vmem [#allocation2], %s315
          %s317 = smul.addr %s20, 8
          %s318 = scalar_lea.vmem %s0, %s317
          // Predicated region
          $region53: #{tpu_custom_call.1} parent=51 // pred_check
            _
          $region54: #{tpu_custom_call.1} parent=51 // pred_check_branch
            %320 = sbr.rel (0) target = $region56
          $region55: #{tpu_custom_call.1} parent=51 // pred_region
            // Predicated region
            $region57: #{tpu_custom_call.1} parent=55 // pred_check
              _
            $region58: #{tpu_custom_call.1} parent=55 // pred_check_branch
              %322 = sbr.rel (0) target = $region60
            $region59: #{tpu_custom_call.1} parent=55 // pred_region
              // Predicated region
              $region72: #{tpu_custom_call.1} parent=59 // pred_check
                _
              $region73: #{tpu_custom_call.1} parent=59 // pred_check_branch
                %344 = sbr.rel (0) target = $region75
              $region74: #{tpu_custom_call.1} parent=59 // pred_region
                loop: start=0, step=1, limit=1
                $region76: #{tpu_custom_call.1} parent=74 // loop_pre_header
                  _
                $region77: #{tpu_custom_call.1} parent=74 // loop_header
                  %s346 = sphi 0, %s350
                  %p347 = scmp.ge.s32.totalorder %s346, 1
                  %s351 = sphi %s318, %s318
                  %s352 = sphi %s316, %s316
                $region78: #{tpu_custom_call.1} parent=74 // loop_header_branch
                  %349 = sbr.rel (%p347) target = $region82
                $region79: #{tpu_custom_call.1} parent=74 // loop_body
                  %v353 = vld [vmem:[%s351] sm:$0xff]
                  %354 = vst [vmem:[%s352] sm:$0xff] %v353
                  %v355 = vld [vmem:[%s351 + $0x10] sm:$0xff]
                  %356 = vst [vmem:[%s352 + $0x8] sm:$0xff] %v355
                  %v357 = vld [vmem:[%s351 + $0x20] sm:$0xff]
                  %358 = vst [vmem:[%s352 + $0x10] sm:$0xff] %v357
                  %v359 = vld [vmem:[%s351 + $0x30] sm:$0xff]
                  %360 = vst [vmem:[%s352 + $0x18] sm:$0xff] %v359
                $region80: #{tpu_custom_call.1} parent=74 // loop_footer
                  %s350 = sadd.s32 1, %s346
                $region81: #{tpu_custom_call.1} parent=74 // loop_footer_branch
                  %345 = sbr.rel target = $region77
                $region82: #{tpu_custom_call.1} parent=74 // loop_exit
                  _
              $region75: #{tpu_custom_call.1} parent=59 // pred_fallthru
                _
              // Predicated region
              $region83: #{tpu_custom_call.1} parent=59 // pred_check
                _
              $region84: #{tpu_custom_call.1} parent=59 // pred_check_branch
                %362 = sbr.rel target = $region86
              $region85: #{tpu_custom_call.1} parent=59 // pred_region
                _
              $region86: #{tpu_custom_call.1} parent=59 // pred_fallthru
                _
            $region60: #{tpu_custom_call.1} parent=55 // pred_fallthru
              _
            // Predicated region
            $region61: #{tpu_custom_call.1} parent=55 // pred_check
              _
            $region62: #{tpu_custom_call.1} parent=55 // pred_check_branch
              %324 = sbr.rel target = $region64
            $region63: #{tpu_custom_call.1} parent=55 // pred_region
              %s326 = ssub.s32 256, 1
              loop: start=0, step=1, limit=1
              $region65: #{tpu_custom_call.1} parent=63 // loop_pre_header
                _
              $region66: #{tpu_custom_call.1} parent=63 // loop_header
                %s328 = sphi 0, %s332
                %p329 = scmp.ge.s32.totalorder %s328, 1
                %s333 = sphi %s318, %s318
                %s334 = sphi %s316, %s316
              $region67: #{tpu_custom_call.1} parent=63 // loop_header_branch
                %331 = sbr.rel (%p329) target = $region71
              $region68: #{tpu_custom_call.1} parent=63 // loop_body
                %v335 = vld [vmem:[%s333] sm:%s326]
                %336 = vst [vmem:[%s334] sm:%s326] %v335
                %v337 = vld [vmem:[%s333 + $0x10] sm:%s326]
                %338 = vst [vmem:[%s334 + $0x8] sm:%s326] %v337
                %v339 = vld [vmem:[%s333 + $0x20] sm:%s326]
                %340 = vst [vmem:[%s334 + $0x10] sm:%s326] %v339
                %v341 = vld [vmem:[%s333 + $0x30] sm:%s326]
                %342 = vst [vmem:[%s334 + $0x18] sm:%s326] %v341
              $region69: #{tpu_custom_call.1} parent=63 // loop_footer
                %s332 = sadd.s32 1, %s328
              $region70: #{tpu_custom_call.1} parent=63 // loop_footer_branch
                %327 = sbr.rel target = $region66
              $region71: #{tpu_custom_call.1} parent=63 // loop_exit
                _
            $region64: #{tpu_custom_call.1} parent=55 // pred_fallthru
              _
          $region56: #{tpu_custom_call.1} parent=51 // pred_fallthru
            _
          %363 = vnop
        $region52: #{tpu_custom_call.1} parent=47 // pred_fallthru
          _
      $region48: #{tpu_custom_call.1} parent=5 // pred_fallthru
        _
      %p364 = scmp.le.s32.totalorder 1, %s20
      %p365 = scmp.lt.s32.totalorder %s20, 3
      %p366 = pnand %p364, %p365
      %p367 = pneg %p366
      // Predicated region
      $region87: #{tpu_custom_call.1} parent=5 // pred_check
        _
      $region88: #{tpu_custom_call.1} parent=5 // pred_check_branch
        %369 = sbr.rel (%p366) target = $region90
      $region89: #{tpu_custom_call.1} parent=5 // pred_region
        %s370 = ssub.s32 %s20, 1
        %s371 = sand.u32 %s33, 1
        %s372 = sand.u32 %s33, 1
        %s373 = smul.addr %s372, 32
        %s374 = scalar_lea.vmem [#allocation2], %s373
        // Predicated region
        $region91: #{tpu_custom_call.1} parent=89 // pred_check
          %p375 = pneg %p46
        $region92: #{tpu_custom_call.1} parent=89 // pred_check_branch
          %377 = sbr.rel (%p375) target = $region94
        $region93: #{tpu_custom_call.1} parent=89 // pred_region
          _
        $region94: #{tpu_custom_call.1} parent=89 // pred_fallthru
          _
        // Predicated region
        $region95: #{tpu_custom_call.1} parent=89 // pred_check
          %p378 = pneg %p130
        $region96: #{tpu_custom_call.1} parent=89 // pred_check_branch
          %380 = sbr.rel (%p378) target = $region98
        $region97: #{tpu_custom_call.1} parent=89 // pred_region
          %382 = dma.done [#allocation4], 16
        $region98: #{tpu_custom_call.1} parent=89 // pred_fallthru
          _
        // Predicated region
        $region99: #{tpu_custom_call.1} parent=89 // pred_check
          %p383 = pneg %p151
        $region100: #{tpu_custom_call.1} parent=89 // pred_check_branch
          %385 = sbr.rel (%p383) target = $region102
        $region101: #{tpu_custom_call.1} parent=89 // pred_region
          %387 = dma.done [#allocation7], 16
        $region102: #{tpu_custom_call.1} parent=89 // pred_fallthru
          _
        // Predicated region
        $region103: #{tpu_custom_call.1} parent=89 // pred_check
          %p388 = pneg %p172
        $region104: #{tpu_custom_call.1} parent=89 // pred_check_branch
          %390 = sbr.rel (%p388) target = $region106
        $region105: #{tpu_custom_call.1} parent=89 // pred_region
          %392 = dma.done [#allocation7], 16
        $region106: #{tpu_custom_call.1} parent=89 // pred_fallthru
          _
        %s393 = sand.u32 %s33, 1
        %s394 = sand.u32 %s33, 1
        %s395 = smul.addr %s394, 32
        %s396 = scalar_lea.vmem [#allocation2], %s395
        %p397 = pneg %p46
        %p398 = pneg %p43
        %p399 = pneg %p67
        %p400 = pneg %p64
        %p401 = pneg %p88
        %p402 = pneg %p85
        %p403 = pneg %p109
        %p404 = pneg %p106
        %p405 = pneg %p130
        %p406 = pneg %p127
        %p407 = pneg %p151
        %p408 = pneg %p148
        %p409 = pneg %p172
        %p410 = pneg %p169
        %p411 = pneg %p193
        %p412 = pneg %p190
        %p413 = pneg %p214
        %p414 = pneg %p211
        %p415 = pneg %p240
        %p416 = pneg %p237
        %s417 = sand.u32 %s227, 1
        %s418 = scalar_lea.sflag [#allocation5], %s417
        %s419 = sand.u32 %s227, 1
        %s420 = smul.addr %s419, 32
        %s421 = scalar_lea.vmem [#allocation9], %s420
        %v422 = vld [vmem:[%s374] sm:$0xff]
        %v423 = vld [vmem:[%s374 + $0x8] sm:$0xff]
        %v424 = vld [vmem:[%s374 + $0x10] sm:$0xff]
        %v425 = vld [vmem:[%s374 + $0x18] sm:$0xff]
        %s426 = scalar_lea.vmem %s1, 32
        %v427 = vld [vmem:[%s426] sm:$0xff]
        %v428 = vld [vmem:[%s426 + $0x8] sm:$0xff]
        %v429 = vld [vmem:[%s426 + $0x10] sm:$0xff]
        %v430 = vld [vmem:[%s426 + $0x18] sm:$0xff]
        %v431 = vld [vmem:[%s1] sm:$0xff]
        %v432 = vld [vmem:[%s1 + $0x8] sm:$0xff]
        %v433 = vld [vmem:[%s1 + $0x10] sm:$0xff]
        %v434 = vld [vmem:[%s1 + $0x18] sm:$0xff]
        %vm435 = vcmask 261120
        %v437 = vsel %vm435, %v431, 0
        %v440 = vsel %vm435, %v432, 0
        %v443 = vsel %vm435, %v433, 0
        %v446 = vsel %vm435, %v434, 0
        %448 = vmatpush.msra.mxu0 0.0
        %449 = vmatpush.msra.mxu0 0.0
        %450 = vmatpush.msra.mxu0 0.0
        %451 = vmatpush.msra.mxu0 0.0
        %452 = vmatpush.msra.mxu0 0.0
        %453 = vmatpush.msra.mxu0 0.0
        %454 = vmatpush.msra.mxu0 0.0
        %455 = vmatpush.msra.mxu0 0.0
        %456 = vmatpush.msra.mxu0 0.0
        %457 = vmatpush.msra.mxu0 0.0
        %458 = vmatpush.msra.mxu0 0.0
        %459 = vmatpush.msra.mxu0 0.0
        %460 = vmatpush.msra.mxu0 %v425
        %461 = vmatpush.msra.mxu0 %v424
        %462 = vmatpush.msra.mxu0 %v423
        %463 = vmatpush.msra.mxu0 %v422
        %464 = vmatmul.f32.gmra.mxu0 %v437
        %v465 = vpop.f32.mrf.mxu0
        %v466 = vadd.f32 0.0, %v465
        %467 = vmatmul.f32.gmra.mxu0 %v440
        %v468 = vpop.f32.mrf.mxu0
        %v469 = vadd.f32 0.0, %v468
        %470 = vmatmul.f32.gmra.mxu0 %v443
        %v471 = vpop.f32.mrf.mxu0
        %v472 = vadd.f32 0.0, %v471
        %473 = vmatmul.f32.gmra.mxu0 %v446
        %v474 = vpop.f32.mrf.mxu0
        %v475 = vadd.f32 0.0, %v474
        %476 = vdwg.mxu0
        %477 = vrot.lane.b32.xlu0 %v466, 1
        %v478 = vpop.permute.xlu0 %477
        %479 = vrot.lane.b32.xlu0 %v469, 1
        %v480 = vpop.permute.xlu0 %479
        %481 = vrot.lane.b32.xlu0 %v472, 1
        %v482 = vpop.permute.xlu0 %481
        %483 = vrot.lane.b32.xlu0 %v475, 1
        %v484 = vpop.permute.xlu0 %483
        %v485 = vld [vmem:[#allocation6] sm:$0x1]
        %v487 = vperm.slane %v485, 0
        %v489 = vmul.f32 %v478, %v487
        %v490 = vmul.f32 %v480, %v487
        %v491 = vmul.f32 %v482, %v487
        %v492 = vmul.f32 %v484, %v487
        %v494 = vsel %vm435, %v427, 0
        %v497 = vsel %vm435, %v428, 0
        %v500 = vsel %vm435, %v429, 0
        %v503 = vsel %vm435, %v430, 0
        %505 = vmatpush.msra.mxu0 0.0
        %506 = vmatpush.msra.mxu0 0.0
        %507 = vmatpush.msra.mxu0 0.0
        %508 = vmatpush.msra.mxu0 0.0
        %509 = vmatpush.msra.mxu0 0.0
        %510 = vmatpush.msra.mxu0 0.0
        %511 = vmatpush.msra.mxu0 0.0
        %512 = vmatpush.msra.mxu0 0.0
        %513 = vmatpush.msra.mxu0 0.0
        %514 = vmatpush.msra.mxu0 0.0
        %515 = vmatpush.msra.mxu0 0.0
        %516 = vmatpush.msra.mxu0 0.0
        %517 = vmatpush.msra.mxu0 %v425
        %518 = vmatpush.msra.mxu0 %v424
        %519 = vmatpush.msra.mxu0 %v423
        %520 = vmatpush.msra.mxu0 %v422
        %521 = vmatmul.f32.gmra.mxu0 %v494
        %v522 = vpop.f32.mrf.mxu0
        %v523 = vadd.f32 %v489, %v522
        %524 = vmatmul.f32.gmra.mxu0 %v497
        %v525 = vpop.f32.mrf.mxu0
        %v526 = vadd.f32 %v490, %v525
        %527 = vmatmul.f32.gmra.mxu0 %v500
        %v528 = vpop.f32.mrf.mxu0
        %v529 = vadd.f32 %v491, %v528
        %530 = vmatmul.f32.gmra.mxu0 %v503
        %v531 = vpop.f32.mrf.mxu0
        %v532 = vadd.f32 %v492, %v531
        %533 = vdwg.mxu0
        %s534 = scalar_lea.vmem %s1, 64
        %v535 = vld [vmem:[%s534] sm:$0xff]
        %v536 = vld [vmem:[%s534 + $0x8] sm:$0xff]
        %v537 = vld [vmem:[%s534 + $0x10] sm:$0xff]
        %v538 = vld [vmem:[%s534 + $0x18] sm:$0xff]
        %v540 = vsel %vm435, %v535, 0
        %v543 = vsel %vm435, %v536, 0
        %v546 = vsel %vm435, %v537, 0
        %v549 = vsel %vm435, %v538, 0
        %551 = vmatpush.msra.mxu0 0.0
        %552 = vmatpush.msra.mxu0 0.0
        %553 = vmatpush.msra.mxu0 0.0
        %554 = vmatpush.msra.mxu0 0.0
        %555 = vmatpush.msra.mxu0 0.0
        %556 = vmatpush.msra.mxu0 0.0
        %557 = vmatpush.msra.mxu0 0.0
        %558 = vmatpush.msra.mxu0 0.0
        %559 = vmatpush.msra.mxu0 0.0
        %560 = vmatpush.msra.mxu0 0.0
        %561 = vmatpush.msra.mxu0 0.0
        %562 = vmatpush.msra.mxu0 0.0
        %563 = vmatpush.msra.mxu0 %v425
        %564 = vmatpush.msra.mxu0 %v424
        %565 = vmatpush.msra.mxu0 %v423
        %566 = vmatpush.msra.mxu0 %v422
        %567 = vmatmul.f32.gmra.mxu0 %v540
        %v568 = vpop.f32.mrf.mxu0
        %v569 = vadd.f32 0.0, %v568
        %570 = vmatmul.f32.gmra.mxu0 %v543
        %v571 = vpop.f32.mrf.mxu0
        %v572 = vadd.f32 0.0, %v571
        %573 = vmatmul.f32.gmra.mxu0 %v546
        %v574 = vpop.f32.mrf.mxu0
        %v575 = vadd.f32 0.0, %v574
        %576 = vmatmul.f32.gmra.mxu0 %v549
        %v577 = vpop.f32.mrf.mxu0
        %v578 = vadd.f32 0.0, %v577
        %579 = vdwg.mxu0
        %580 = vrot.lane.b32.xlu0 %v569, 127
        %v581 = vpop.permute.xlu0 %580
        %582 = vrot.lane.b32.xlu0 %v572, 127
        %v583 = vpop.permute.xlu0 %582
        %584 = vrot.lane.b32.xlu0 %v575, 127
        %v585 = vpop.permute.xlu0 %584
        %586 = vrot.lane.b32.xlu0 %v578, 127
        %v587 = vpop.permute.xlu0 %586
        %v588 = vld [vmem:[#allocation8] sm:$0x1]
        %v590 = vperm.slane %v588, 0
        %v592 = vmul.f32 %v581, %v590
        %v593 = vmul.f32 %v583, %v590
        %v594 = vmul.f32 %v585, %v590
        %v595 = vmul.f32 %v587, %v590
        %v596 = vadd.f32 %v523, %v592
        %v597 = vadd.f32 %v526, %v593
        %v598 = vadd.f32 %v529, %v594
        %v599 = vadd.f32 %v532, %v595
        %v600 = vld [vmem:[%s2] sm:$0xff]
        %v601 = vld [vmem:[%s2 + $0x8] sm:$0xff]
        %v602 = vld [vmem:[%s2 + $0x10] sm:$0xff]
        %v603 = vld [vmem:[%s2 + $0x18] sm:$0xff]
        %605 = vset.pattern.permute.xlu0 0
        %606 = vperm.xlu0 %605, %v600
        %v607 = vpop.permute.xlu0 %606
        %610 = vset.pattern.permute.xlu0 0
        %611 = vperm.xlu0 %610, %v601
        %v612 = vpop.permute.xlu0 %611
        %615 = vset.pattern.permute.xlu0 0
        %616 = vperm.xlu0 %615, %v602
        %v617 = vpop.permute.xlu0 %616
        %620 = vset.pattern.permute.xlu0 0
        %621 = vperm.xlu0 %620, %v603
        %v622 = vpop.permute.xlu0 %621
        %v624 = vadd.f32 %v596, %v607
        %v625 = vadd.f32 %v597, %v612
        %v626 = vadd.f32 %v598, %v617
        %v627 = vadd.f32 %v599, %v622
        %v628 = vmax.f32 %v624, 0.0
        %v629 = vmax.f32 %v625, 0.0
        %v630 = vmax.f32 %v626, 0.0
        %v631 = vmax.f32 %v627, 0.0
        %v632 = vadd.f32 %v628, %v422
        %v633 = vadd.f32 %v629, %v423
        %v634 = vadd.f32 %v630, %v424
        %v635 = vadd.f32 %v631, %v425
        %v636 = vld [vmem:[%s7] sm:$0xff]
        %v637 = vld [vmem:[%s7 + $0x8] sm:$0xff]
        %v638 = vld [vmem:[%s7 + $0x10] sm:$0xff]
        %v639 = vld [vmem:[%s7 + $0x18] sm:$0xff]
        %v640 = vld [vmem:[%s7 + $0x20] sm:$0xff]
        %v641 = vld [vmem:[%s7 + $0x28] sm:$0xff]
        %v642 = vld [vmem:[%s7 + $0x30] sm:$0xff]
        %v643 = vld [vmem:[%s7 + $0x38] sm:$0xff]
        %v644 = vld [vmem:[%s7 + $0x40] sm:$0xff]
        %v645 = vld [vmem:[%s7 + $0x48] sm:$0xff]
        %v646 = vld [vmem:[%s7 + $0x50] sm:$0xff]
        %v647 = vld [vmem:[%s7 + $0x58] sm:$0xff]
        %v648 = vld [vmem:[%s7 + $0x60] sm:$0xff]
        %v649 = vld [vmem:[%s7 + $0x68] sm:$0xff]
        %v650 = vld [vmem:[%s7 + $0x70] sm:$0xff]
        %v651 = vld [vmem:[%s7 + $0x78] sm:$0xff]
        %652 = vmatpush.msra.mxu0 %v651
        %653 = vmatpush.msra.mxu0 %v650
        %654 = vmatpush.msra.mxu0 %v649
        %655 = vmatpush.msra.mxu0 %v648
        %656 = vmatpush.msra.mxu0 %v647
        %657 = vmatpush.msra.mxu0 %v646
        %658 = vmatpush.msra.mxu0 %v645
        %659 = vmatpush.msra.mxu0 %v644
        %660 = vmatpush.msra.mxu0 %v643
        %661 = vmatpush.msra.mxu0 %v642
        %662 = vmatpush.msra.mxu0 %v641
        %663 = vmatpush.msra.mxu0 %v640
        %664 = vmatpush.msra.mxu0 %v639
        %665 = vmatpush.msra.mxu0 %v638
        %666 = vmatpush.msra.mxu0 %v637
        %667 = vmatpush.msra.mxu0 %v636
        %668 = vmatmul.f32.gmra.mxu0 %v632
        %v669 = vpop.f32.mrf.mxu0
        %v670 = vadd.f32 0.0, %v669
        %671 = vmatmul.f32.gmra.mxu0 %v633
        %v672 = vpop.f32.mrf.mxu0
        %v673 = vadd.f32 0.0, %v672
        %674 = vmatmul.f32.gmra.mxu0 %v634
        %v675 = vpop.f32.mrf.mxu0
        %v676 = vadd.f32 0.0, %v675
        %677 = vmatmul.f32.gmra.mxu0 %v635
        %v678 = vpop.f32.mrf.mxu0
        %v679 = vadd.f32 0.0, %v678
        %680 = vdwg.mxu0
        %v681 = vmul.f32 %v632, %v632
        %v682 = vmul.f32 %v633, %v633
        %v683 = vmul.f32 %v634, %v634
        %v684 = vmul.f32 %v635, %v635
        %685 = vmatpush.msra.mxu0 %v651
        %686 = vmatpush.msra.mxu0 %v650
        %687 = vmatpush.msra.mxu0 %v649
        %688 = vmatpush.msra.mxu0 %v648
        %689 = vmatpush.msra.mxu0 %v647
        %690 = vmatpush.msra.mxu0 %v646
        %691 = vmatpush.msra.mxu0 %v645
        %692 = vmatpush.msra.mxu0 %v644
        %693 = vmatpush.msra.mxu0 %v643
        %694 = vmatpush.msra.mxu0 %v642
        %695 = vmatpush.msra.mxu0 %v641
        %696 = vmatpush.msra.mxu0 %v640
        %697 = vmatpush.msra.mxu0 %v639
        %698 = vmatpush.msra.mxu0 %v638
        %699 = vmatpush.msra.mxu0 %v637
        %700 = vmatpush.msra.mxu0 %v636
        %701 = vmatmul.f32.gmra.mxu0 %v681
        %v702 = vpop.f32.mrf.mxu0
        %v703 = vadd.f32 0.0, %v702
        %704 = vmatmul.f32.gmra.mxu0 %v682
        %v705 = vpop.f32.mrf.mxu0
        %v706 = vadd.f32 0.0, %v705
        %707 = vmatmul.f32.gmra.mxu0 %v683
        %v708 = vpop.f32.mrf.mxu0
        %v709 = vadd.f32 0.0, %v708
        %710 = vmatmul.f32.gmra.mxu0 %v684
        %v711 = vpop.f32.mrf.mxu0
        %v712 = vadd.f32 0.0, %v711
        %713 = vdwg.mxu0
        %v714 = vmul.f32 %v670, %v670
        %v715 = vmul.f32 %v673, %v673
        %v716 = vmul.f32 %v676, %v676
        %v717 = vmul.f32 %v679, %v679
        %v718 = vsub.f32 %v703, %v714
        %v719 = vsub.f32 %v706, %v715
        %v720 = vsub.f32 %v709, %v716
        %v721 = vsub.f32 %v712, %v717
        %v722 = vmax.f32 %v718, 0.0
        %v723 = vmax.f32 %v719, 0.0
        %v724 = vmax.f32 %v720, 0.0
        %v725 = vmax.f32 %v721, 0.0
        %v726 = vadd.f32 %v722, 1e-06
        %v727 = vadd.f32 %v723, 1e-06
        %v728 = vadd.f32 %v724, 1e-06
        %v729 = vadd.f32 %v725, 1e-06
        %v730 = vrsqrt.pop %v726
        %v731 = vmul.f32 %v730, %v726
        %v732 = vmul.f32 %v731, %v730
        %v733 = vmul.f32 0.5, %v732
        %v734 = vsub.f32 1.5, %v733
        %v735 = vmul.f32 %v730, %v734
        %vm736 = vweird.f32 %v726
        %vm737 = vweird.f32 %v730
        %vm738 = vmor %vm736, %vm737
        %v739 = vsel %vm738, %v730, %v735
        %v740 = vrsqrt.pop %v727
        %v741 = vmul.f32 %v740, %v727
        %v742 = vmul.f32 %v741, %v740
        %v743 = vmul.f32 0.5, %v742
        %v744 = vsub.f32 1.5, %v743
        %v745 = vmul.f32 %v740, %v744
        %vm746 = vweird.f32 %v727
        %vm747 = vweird.f32 %v740
        %vm748 = vmor %vm746, %vm747
        %v749 = vsel %vm748, %v740, %v745
        %v750 = vrsqrt.pop %v728
        %v751 = vmul.f32 %v750, %v728
        %v752 = vmul.f32 %v751, %v750
        %v753 = vmul.f32 0.5, %v752
        %v754 = vsub.f32 1.5, %v753
        %v755 = vmul.f32 %v750, %v754
        %vm756 = vweird.f32 %v728
        %vm757 = vweird.f32 %v750
        %vm758 = vmor %vm756, %vm757
        %v759 = vsel %vm758, %v750, %v755
        %v760 = vrsqrt.pop %v729
        %v761 = vmul.f32 %v760, %v729
        %v762 = vmul.f32 %v761, %v760
        %v763 = vmul.f32 0.5, %v762
        %v764 = vsub.f32 1.5, %v763
        %v765 = vmul.f32 %v760, %v764
        %vm766 = vweird.f32 %v729
        %vm767 = vweird.f32 %v760
        %vm768 = vmor %vm766, %vm767
        %v769 = vsel %vm768, %v760, %v765
        %v770 = vld [vmem:[%s8] sm:$0xf]
        %vm771 = vcmask 31744
        %v773 = vsel %vm771, %v670, 0
        %v776 = vsel %vm771, %v673, 0
        %v779 = vsel %vm771, %v676, 0
        %v782 = vsel %vm771, %v679, 0
        %vm784 = vcmask 1043456
        %v786 = vsel %vm784, %v770, 0
        %788 = vmatpush.msra.mxu0 0.0
        %789 = vmatpush.msra.mxu0 0.0
        %790 = vmatpush.msra.mxu0 0.0
        %791 = vmatpush.msra.mxu0 0.0
        %792 = vmatpush.msra.mxu0 0.0
        %793 = vmatpush.msra.mxu0 0.0
        %794 = vmatpush.msra.mxu0 0.0
        %795 = vmatpush.msra.mxu0 0.0
        %796 = vmatpush.msra.mxu0 0.0
        %797 = vmatpush.msra.mxu0 0.0
        %798 = vmatpush.msra.mxu0 0.0
        %799 = vmatpush.msra.mxu0 0.0
        %800 = vmatpush.msra.mxu0 0.0
        %801 = vmatpush.msra.mxu0 0.0
        %802 = vmatpush.msra.mxu0 0.0
        %803 = vmatpush.msra.mxu0 %v786
        %804 = vmatmul.f32.gmra.mxu0 %v773
        %v805 = vpop.f32.mrf.mxu0
        %v806 = vadd.f32 0.0, %v805
        %807 = vmatmul.f32.gmra.mxu0 %v776
        %v808 = vpop.f32.mrf.mxu0
        %v809 = vadd.f32 0.0, %v808
        %810 = vmatmul.f32.gmra.mxu0 %v779
        %v811 = vpop.f32.mrf.mxu0
        %v812 = vadd.f32 0.0, %v811
        %813 = vmatmul.f32.gmra.mxu0 %v782
        %v814 = vpop.f32.mrf.mxu0
        %v815 = vadd.f32 0.0, %v814
        %816 = vdwg.mxu0
        %v818 = vsel %vm771, %v739, 0
        %v821 = vsel %vm771, %v749, 0
        %v824 = vsel %vm771, %v759, 0
        %v827 = vsel %vm771, %v769, 0
        %829 = vmatpush.msra.mxu0 0.0
        %830 = vmatpush.msra.mxu0 0.0
        %831 = vmatpush.msra.mxu0 0.0
        %832 = vmatpush.msra.mxu0 0.0
        %833 = vmatpush.msra.mxu0 0.0
        %834 = vmatpush.msra.mxu0 0.0
        %835 = vmatpush.msra.mxu0 0.0
        %836 = vmatpush.msra.mxu0 0.0
        %837 = vmatpush.msra.mxu0 0.0
        %838 = vmatpush.msra.mxu0 0.0
        %839 = vmatpush.msra.mxu0 0.0
        %840 = vmatpush.msra.mxu0 0.0
        %841 = vmatpush.msra.mxu0 0.0
        %842 = vmatpush.msra.mxu0 0.0
        %843 = vmatpush.msra.mxu0 0.0
        %844 = vmatpush.msra.mxu0 %v786
        %845 = vmatmul.f32.gmra.mxu0 %v818
        %v846 = vpop.f32.mrf.mxu0
        %v847 = vadd.f32 0.0, %v846
        %848 = vmatmul.f32.gmra.mxu0 %v821
        %v849 = vpop.f32.mrf.mxu0
        %v850 = vadd.f32 0.0, %v849
        %851 = vmatmul.f32.gmra.mxu0 %v824
        %v852 = vpop.f32.mrf.mxu0
        %v853 = vadd.f32 0.0, %v852
        %854 = vmatmul.f32.gmra.mxu0 %v827
        %v855 = vpop.f32.mrf.mxu0
        %v856 = vadd.f32 0.0, %v855
        %857 = vdwg.mxu0
        %v858 = vsub.f32 %v632, %v806
        %v859 = vsub.f32 %v633, %v809
        %v860 = vsub.f32 %v634, %v812
        %v861 = vsub.f32 %v635, %v815
        %v862 = vmul.f32 %v858, %v847
        %v863 = vmul.f32 %v859, %v850
        %v864 = vmul.f32 %v860, %v853
        %v865 = vmul.f32 %v861, %v856
        %v866 = vld [vmem:[%s3] sm:$0x1]
        %v868 = vperm.slane %v866, 0
        %v870 = vmul.f32 %v862, %v868
        %v871 = vmul.f32 %v863, %v868
        %v872 = vmul.f32 %v864, %v868
        %v873 = vmul.f32 %v865, %v868
        %v874 = vld [vmem:[#allocation3] sm:$0x1]
        %v876 = vperm.slane %v874, 0
        %v878 = vadd.f32 %v870, %v876
        %v879 = vadd.f32 %v871, %v876
        %v880 = vadd.f32 %v872, %v876
        %v881 = vadd.f32 %v873, %v876
        %882 = vst [vmem:[%s421] sm:$0xff] %v878
        %883 = vst [vmem:[%s421 + $0x8] sm:$0xff] %v879
        %884 = vst [vmem:[%s421 + $0x10] sm:$0xff] %v880
        %885 = vst [vmem:[%s421 + $0x18] sm:$0xff] %v881
        %s886 = sand.u32 %s227, 1
        %s887 = scalar_lea.sflag [#allocation5], %s886
        %s888 = sand.u32 %s227, 1
        %s889 = smul.addr %s888, 32
        %s890 = scalar_lea.vmem [#allocation9], %s889
        // Predicated region
        $region107: #{tpu_custom_call.1} parent=89 // pred_check
          %p891 = pneg %p237
        $region108: #{tpu_custom_call.1} parent=89 // pred_check_branch
          %893 = sbr.rel (%p891) target = $region110
        $region109: #{tpu_custom_call.1} parent=89 // pred_region
          %895 = vsyncadd %s887, 0
          %s896 = smul.addr %s25, 8
          %s897 = scalar_lea.hbm %s9, %s896
          %s898 = sshll.u32 %s890, 4
          %s899 = int_to_ptr.vmem [resolvable:$true] %s898
          %s900 = sshll.u32 %s897, 4
          %s901 = int_to_ptr.hbm [resolvable:$true] %s900
          %906 = dma.vmem_to_hbm [thread:$0]  %s899, 512, %s901, %s887, 128, 256, 8
        $region110: #{tpu_custom_call.1} parent=89 // pred_fallthru
          _
      $region90: #{tpu_custom_call.1} parent=5 // pred_fallthru
        _
      %p907 = scmp.le.s32.totalorder 2, %s20
      // Predicated region
      $region111: #{tpu_custom_call.1} parent=5 // pred_check
        %p908 = pneg %p907
      $region112: #{tpu_custom_call.1} parent=5 // pred_check_branch
        %910 = sbr.rel (%p908) target = $region114
      $region113: #{tpu_custom_call.1} parent=5 // pred_region
        %s911 = ssub.s32 %s20, 2
        // Predicated region
        $region115: #{tpu_custom_call.1} parent=113 // pred_check
          %p912 = pneg %p243
        $region116: #{tpu_custom_call.1} parent=113 // pred_check_branch
          %914 = sbr.rel (%p912) target = $region118
        $region117: #{tpu_custom_call.1} parent=113 // pred_region
          %s915 = sand.u32 %s228, 1
          %s916 = scalar_lea.sflag [#allocation5], %s915
          %s917 = sand.u32 %s228, 1
          %s918 = smul.addr %s917, 32
          %s919 = scalar_lea.vmem [#allocation9], %s918
          %921 = dma.done %s916, 512
        $region118: #{tpu_custom_call.1} parent=113 // pred_fallthru
          _
      $region114: #{tpu_custom_call.1} parent=5 // pred_fallthru
        _
    $region6: #{tpu_custom_call.1} parent=1 // loop_footer
      %s24 = sadd.s32 1, %s20
    $region7: #{tpu_custom_call.1} parent=1 // loop_footer_branch
      %19 = sbr.rel target = $region3
    $region8: #{tpu_custom_call.1} parent=1 // loop_exit
      _
    %922 = vsyncpa [#allocation4], 1
    %s923 = scalar_lea.sflag [#allocation4], 1
    %924 = vsyncpa %s923, 1
    %925 = vsyncpa [#allocation7], 1
    %926 = vsyncpa [#allocation5], 1
    %s927 = scalar_lea.sflag [#allocation5], 1
    %928 = vsyncpa %s927, 1

</llo_original>
